<compile_context>
chip_gen: v5e
topology: v5e:2x2
jax: 0.10.0
libtpu: 0.0.40
codegen_flags: <defaults>
</compile_context>

<pallas_src>
import math
import numpy as np
import jax
import jax.numpy as jnp
from jax.experimental import pallas as pl
from jax.experimental.pallas import tpu as pltpu


# ----------------------------------------------------------------------------
# Kernel: pure broadcast-store of a precomputed lane-dense pattern tile.
# ----------------------------------------------------------------------------
def _broadcast_kernel(pattern_ref, out_ref):
    # pattern_ref: (block_rows, 128) f32 — repeating flattened (D, D) matrices
    # out_ref:     (block_rows, 128) f32 — one output tile of the packed slab
    out_ref[...] = pattern_ref[...]


def _build_dense_matrix(flat_chol, state_space_size):
    """Scatter flat lower-tri params into a flattened (D, D) matrix and apply
    softplus to the diagonal. Pure (tiny) JAX, done once outside the kernel."""
    D = int(state_space_size)
    DD = D * D
    rows, cols = np.tril_indices(D)            # row-major == torch.tril_indices
    dense_pos = rows * D + cols                # (L,)
    diag_mask = np.zeros((DD,), bool)
    diag_mask[np.arange(D) * (D + 1)] = True

    m_flat = jnp.zeros((DD,), jnp.float32).at[dense_pos].set(
        flat_chol.astype(jnp.float32))
    m_flat = jnp.where(jnp.asarray(diag_mask), jax.nn.softplus(m_flat), m_flat)
    return m_flat                              # (DD,)


def _maybe_check_constant(sigma2_schedule):
    # Replicates the PyTorch "time constant" assert, but only in eager mode
    # (concrete values); skipped under jit tracing so no forced host sync.
    if isinstance(sigma2_schedule, jax.core.Tracer):
        return
    s = np.asarray(sigma2_schedule).reshape(-1)
    if s.size >= 1:
        assert np.all(s == s[0]), (
            "TimeConstantNoiseProcessCovarGenerator should not be used for "
            "non-constant forward time noise injection!")


def time_constant_noise_covar(flat_chol, sigma2_schedule, t_schedule,
                              state_space_size, *, block_rows=1024):
    D = int(state_space_size)
    L = D * (D + 1) // 2
    DD = D * D
    assert sigma2_schedule.shape == t_schedule.shape, \
        (sigma2_schedule.shape, t_schedule.shape)
    assert flat_chol.shape == (L,)

    _maybe_check_constant(sigma2_schedule)

    sched_shape = tuple(sigma2_schedule.shape)
    T = int(np.prod(sched_shape)) if sched_shape else 1
    N = T * DD                                          # total output elements

    # Time-constant matrix, built once outside the kernel.
    m_flat = _build_dense_matrix(flat_chol, D)          # (DD,)

    # ---- lane-dense packing geometry ----------------------------------------
    # Flattened output is the DD-length pattern repeated T times, viewed as
    # (rows, 128). The pattern of a whole tile repeats every lcm(DD, 128)
    # elements; tiles must also satisfy the (8, 128) block constraint.
    period_rows = math.lcm(DD, 128) // 128              # rows per repeat period
    unit = math.lcm(8, period_rows)                     # min legal tile rows
    rows_needed = pl.cdiv(N, 128)

    # Tiny schedules: Pallas launch cost >> writing a few hundred bytes.
    if rows_needed < unit:
        out = jnp.broadcast_to(m_flat.reshape(1, D, D), (T, D, D))
        return out.reshape(*sched_shape, D, D)

    # Clamp requested tile size to a legal multiple of `unit`, no bigger than
    # the (unit-padded) total row count.
    rows_padded_min = pl.cdiv(rows_needed, unit) * unit
    block_rows = max(unit, (int(block_rows) // unit) * unit)
    block_rows = min(block_rows, rows_padded_min)
    rows_padded = pl.cdiv(rows_needed, block_rows) * block_rows
    grid = (rows_padded // block_rows,)

    # Precompute one lane-dense pattern tile (block_rows, 128). Because
    # block_rows * 128 is a multiple of lcm(DD, 128), every output tile equals
    # this same tile, so its BlockSpec index never changes (DMA'd once).
    reps = (block_rows * 128) // DD
    pattern = jnp.tile(m_flat, reps).reshape(block_rows, 128)

    tile_bytes = block_rows * 128 * 4
    out_packed = pl.pallas_call(
        _broadcast_kernel,
        out_shape=jax.ShapeDtypeStruct((rows_padded, 128), jnp.float32),
        grid_spec=pltpu.PrefetchScalarGridSpec(
            num_scalar_prefetch=0,
            grid=grid,
            in_specs=[pl.BlockSpec((block_rows, 128), lambda i: (0, 0))],
            out_specs=pl.BlockSpec((block_rows, 128), lambda i: (i, 0)),
        ),
        compiler_params=pltpu.CompilerParams(
            dimension_semantics=("parallel",)),
        cost_estimate=pl.CostEstimate(
            flops=0, transcendentals=0,
            bytes_accessed=rows_padded * 128 * 4 + tile_bytes),
    )(pattern)

    out = out_packed.reshape(-1)[:N].reshape(T, D, D)
    return out.reshape(*sched_shape, D, D)


# ----------------------------------------------------------------------------
# Reference + self-test
# ----------------------------------------------------------------------------
def _reference(flat_chol, sigma2_schedule, state_space_size):
    # Pure numpy reference mirroring the PyTorch forward.
    D = int(state_space_size)
    T = int(sigma2_schedule.shape[0])
    out = np.zeros((T, D, D), np.float32)
    r, c = np.tril_indices(D)
    out[:, r, c] = np.asarray(flat_chol, np.float32)
    d = np.arange(D)
    out[:, d, d] = np.logaddexp(out[:, d, d], 0.0)      # softplus
    return out


if __name__ == "__main__":
    key = jax.random.PRNGKey(0)
    D = 4                               # state_space_size
    L = D * (D + 1) // 2                # final_output_size = 10
    T = 128                             # schedule length (small; 2 grid steps)

    k_param, _ = jax.random.split(key)
    # Deterministic init mirroring torch.randn(L) / state_space_size
    flat_noise_sigma_chol = (jax.random.normal(k_param, (L,)) / D).astype(jnp.float32)

    sigma2_schedule = jnp.full((T,), 0.1, dtype=jnp.float32)   # time-constant
    t_schedule = jnp.arange(T, dtype=jnp.float32)

    out = time_constant_noise_covar(flat_noise_sigma_chol, sigma2_schedule,
                                    t_schedule, D, block_rows=8)
    out = jax.block_until_ready(out)

    ref = _reference(flat_noise_sigma_chol, sigma2_schedule, D)
    np.testing.assert_allclose(np.asarray(out), ref, rtol=1e-5, atol=1e-6)
    assert out.shape == (T, D, D) and out.dtype == jnp.float32

    print("KERNEL_OK")
</pallas_src>

<mosaic_0001>
module attributes {stable_mosaic.version = 11 : i64} {
  func.func @_broadcast_kernel(%arg0: i32, %arg1: memref<8x128xf32, #tpu.memory_space<vmem>>, %arg2: memref<8x128xf32, #tpu.memory_space<vmem>>) attributes {dimension_semantics = [#tpu.dimension_semantics<parallel>], iteration_bounds = array<i64: 2>, scalar_prefetch = 0 : i64, scratch_operands = 0 : i64, tpu.core_type = #tpu.core_type<tc>, window_params = [{pipeline_mode = #tpu.pipeline_mode<synchronous>, transform_indices = @transform_0, window_bounds = array<i64: 8, 128>}, {transform_indices = @transform_1, window_bounds = array<i64: 8, 128>}]} {
    %c0 = arith.constant 0 : index
    %c0_0 = arith.constant 0 : index
    %0 = vector.load %arg1[%c0, %c0_0] : memref<8x128xf32, #tpu.memory_space<vmem>>, vector<8x128xf32>
    %c0_1 = arith.constant 0 : index
    %c0_2 = arith.constant 0 : index
    %1 = vector.load %arg2[%c0_1, %c0_2] : memref<8x128xf32, #tpu.memory_space<vmem>>, vector<8x128xf32>
    tpu.vector_store %arg2[%c0_1, %c0_2], %0 {strides = array<i32>} : memref<8x128xf32, #tpu.memory_space<vmem>>, vector<8x128xf32>,
    return
  }
  func.func @transform_0(%arg0: i32) -> (i32, i32) {
    %c0_i32 = arith.constant 0 : i32
    %c0_i32_0 = arith.constant 0 : i32
    %c0_i32_1 = arith.constant 0 : i32
    return %c0_i32, %c0_i32_0 : i32, i32
  }
  func.func @transform_1(%arg0: i32) -> (i32, i32) {
    %c0_i32 = arith.constant 0 : i32
    %c0_i32_0 = arith.constant 0 : i32
    return %arg0, %c0_i32 : i32, i32
  }
}

</mosaic_0001>

<llo_original>
// kernel: tpu_custom_call.1
$region0: #{tpu_custom_call.1}
  #allocation0 [shape = 'u32[]', space=smem, size = 0x4, offset = 0x4, fixed_abs, tag = 'smem constant byte address 0x4 - core index']
  #allocation1 [shape = 'u32[72,128]{1,0:T(1,128)}', space=vmem, size = 0x9000, scoped, tag = 'internal scratch']
  %s0 = inlined_call_operand.hbm [shape: f32[8,128], index: 0, kind: input, shape index: {}]
  %s1 = inlined_call_operand.hbm [shape: f32[16,128], index: 1, kind: output, shape index: {}]
  %s2 = sld [smem:[#allocation0]]
  $region41: #{tpu_custom_call.1} parent=0
    _
  %s4 = ssub.s32 1, %s2
  %s5 = scalar_select 0, %s4, %s2
  $region1: #{tpu_custom_call.1} parent=0
    #allocation2 [shape = 'u8[4096]{0}', space=vmem, size = 0x1000, scoped, tag = 'input window, operand 0, single buffered']
    #allocation3 [shape = 's32[2]{0}', space=sflag, size = 0x8, scoped, tag = 'scoped memory for tpu_custom_call.1']
    #allocation4 [shape = 's32[2]{0}', space=sflag, size = 0x8, scoped, tag = 'scoped memory for tpu_custom_call.1']
    #allocation5 [shape = 'u8[8192]{0}', space=vmem, size = 0x2000, scoped, tag = 'output window, operand 0']
    %6 = vsyncpa [#allocation3], 0
    %7 = vsyncpa [#allocation4], 0
    %s8 = scalar_lea.sflag [#allocation4], 1
    %9 = vsyncpa %s8, 0
    loop: start=0, step=1, limit=4
    $region2: #{tpu_custom_call.1} parent=1 // loop_pre_header
      _
    $region3: #{tpu_custom_call.1} parent=1 // loop_header
      %s11 = sphi 0, %s15
      %p12 = scmp.ge.s32.totalorder %s11, 4
      %s19 = sphi 0, %s19
      %s21 = sphi 0, %s19
      %s22 = sphi 0, %s21
      %s36 = sphi 0, %s22
      %s42 = sphi 0, %s44
      %s45 = sphi 0, %s42
      %s46 = sphi 0, %s45
      %s62 = sphi 0, %s46
    $region4: #{tpu_custom_call.1} parent=1 // loop_header_branch
      %14 = sbr.rel (%p12) target = $region8
    $region5: #{tpu_custom_call.1} parent=1 // loop_body
      %s16 = ssub.s32 %s11, 1
      %s17 = ssub.s32 %s11, 2
      %s18 = sadd.s32 %s11, 1
      %s20 = sadd.s32 %s19, 1
      %p23 = scmp.eq.s32.totalorder %s11, 1
      %p24 = scmp.ne.s32.totalorder %s19, %s21
      %p25 = scmp.eq.s32.totalorder %s11, 0
      %p26 = por %p24, %p25
      %p27 = scmp.ne.s32.totalorder %s19, %s21
      %p28 = scmp.eq.s32.totalorder %s16, 1
      %p29 = por %p27, %p28
      %p30 = scmp.ne.s32.totalorder %s21, %s22
      %p31 = scmp.eq.s32.totalorder %s16, 0
      %p32 = por %p30, %p31
      %p33 = scmp.ne.s32.totalorder %s21, %s22
      %p34 = scmp.eq.s32.totalorder %s17, 1
      %p35 = por %p33, %p34
      %p37 = scmp.ne.s32.totalorder %s22, %s36
      %p38 = scmp.eq.s32.totalorder %s17, 0
      %p39 = por %p37, %p38
      %s40 = ssub.s32 %s11, %s18
      %p41 = scmp.eq.s32.totalorder %s40, 0
      %s43 = sadd.s32 %s42, 1
      %s44 = scalar_select %p41, %s42, %s43
      %p47 = pneg %p41
      %p48 = scmp.eq.s32.totalorder %s11, 1
      %p49 = por %p47, %p48
      %p50 = scmp.ne.s32.totalorder %s42, %s45
      %p51 = scmp.eq.s32.totalorder %s11, 0
      %p52 = por %p50, %p51
      %p53 = scmp.ne.s32.totalorder %s42, %s45
      %p54 = scmp.eq.s32.totalorder %s16, 1
      %p55 = por %p53, %p54
      %p56 = scmp.ne.s32.totalorder %s45, %s46
      %p57 = scmp.eq.s32.totalorder %s16, 0
      %p58 = por %p56, %p57
      %p59 = scmp.ne.s32.totalorder %s45, %s46
      %p60 = scmp.eq.s32.totalorder %s17, 1
      %p61 = por %p59, %p60
      %p63 = scmp.ne.s32.totalorder %s46, %s62
      %p64 = scmp.eq.s32.totalorder %s17, 0
      %p65 = por %p63, %p64
      %p66 = scmp.le.s32.totalorder 1, %s11
      %p67 = scmp.lt.s32.totalorder %s11, 3
      %p68 = pnand %p66, %p67
      %p69 = pneg %p68
      // Predicated region
      $region9: #{tpu_custom_call.1} parent=5 // pred_check
        _
      $region10: #{tpu_custom_call.1} parent=5 // pred_check_branch
        %71 = sbr.rel (%p68) target = $region12
      $region11: #{tpu_custom_call.1} parent=5 // pred_region
        %s72 = ssub.s32 %s11, 1
        // Predicated region
        $region13: #{tpu_custom_call.1} parent=11 // pred_check
          %p73 = pneg %p32
        $region14: #{tpu_custom_call.1} parent=11 // pred_check_branch
          %75 = sbr.rel (%p73) target = $region16
        $region15: #{tpu_custom_call.1} parent=11 // pred_region
          %77 = vsyncadd [#allocation3], 0
          %s79 = sshll.u32 %s0, 4
          %s80 = int_to_ptr.hbm [resolvable:$true] %s79
          %s81 = sshll.u32 [#allocation2], 4
          %s82 = int_to_ptr.vmem [resolvable:$true] %s81
          %84 = dma.hbm_to_vmem [thread:$0]  %s80, 128, %s82, [#allocation3]
        $region16: #{tpu_custom_call.1} parent=11 // pred_fallthru
          _
      $region12: #{tpu_custom_call.1} parent=5 // pred_fallthru
        _
      %p85 = scmp.lt.s32.totalorder %s11, 2
      // Predicated region
      $region17: #{tpu_custom_call.1} parent=5 // pred_check
        %p86 = pneg %p85
      $region18: #{tpu_custom_call.1} parent=5 // pred_check_branch
        %88 = sbr.rel (%p86) target = $region20
      $region19: #{tpu_custom_call.1} parent=5 // pred_region
        _
      $region20: #{tpu_custom_call.1} parent=5 // pred_fallthru
        _
      %p89 = scmp.le.s32.totalorder 1, %s11
      %p90 = scmp.lt.s32.totalorder %s11, 3
      %p91 = pnand %p89, %p90
      %p92 = pneg %p91
      // Predicated region
      $region21: #{tpu_custom_call.1} parent=5 // pred_check
        _
      $region22: #{tpu_custom_call.1} parent=5 // pred_check_branch
        %94 = sbr.rel (%p91) target = $region24
      $region23: #{tpu_custom_call.1} parent=5 // pred_region
        %s95 = ssub.s32 %s11, 1
        // Predicated region
        $region25: #{tpu_custom_call.1} parent=23 // pred_check
          %p96 = pneg %p32
        $region26: #{tpu_custom_call.1} parent=23 // pred_check_branch
          %98 = sbr.rel (%p96) target = $region28
        $region27: #{tpu_custom_call.1} parent=23 // pred_region
          %100 = dma.done [#allocation3], 128
        $region28: #{tpu_custom_call.1} parent=23 // pred_fallthru
          _
        %p101 = pneg %p32
        %p102 = pneg %p29
        %p103 = pneg %p58
        %p104 = pneg %p55
        %s105 = sand.u32 %s45, 1
        %s106 = scalar_lea.sflag [#allocation4], %s105
        %s107 = sand.u32 %s45, 1
        %s108 = smul.addr %s107, 8
        %s109 = scalar_lea.vmem [#allocation5], %s108
        %v110 = vld [vmem:[#allocation2] sm:$0xff]
        %111 = vst [vmem:[%s109] sm:$0xff] %v110
        %s112 = sand.u32 %s45, 1
        %s113 = scalar_lea.sflag [#allocation4], %s112
        %s114 = sand.u32 %s45, 1
        %s115 = smul.addr %s114, 8
        %s116 = scalar_lea.vmem [#allocation5], %s115
        // Predicated region
        $region29: #{tpu_custom_call.1} parent=23 // pred_check
          %p117 = pneg %p55
        $region30: #{tpu_custom_call.1} parent=23 // pred_check_branch
          %119 = sbr.rel (%p117) target = $region32
        $region31: #{tpu_custom_call.1} parent=23 // pred_region
          %121 = vsyncadd %s113, 0
          %s122 = smul.addr %s16, 8
          %s123 = scalar_lea.hbm %s1, %s122
          %s125 = sshll.u32 %s116, 4
          %s126 = int_to_ptr.vmem [resolvable:$true] %s125
          %s127 = sshll.u32 %s123, 4
          %s128 = int_to_ptr.hbm [resolvable:$true] %s127
          %130 = dma.vmem_to_hbm [thread:$0]  %s126, 128, %s128, %s113
        $region32: #{tpu_custom_call.1} parent=23 // pred_fallthru
          _
      $region24: #{tpu_custom_call.1} parent=5 // pred_fallthru
        _
      %p131 = scmp.le.s32.totalorder 2, %s11
      // Predicated region
      $region33: #{tpu_custom_call.1} parent=5 // pred_check
        %p132 = pneg %p131
      $region34: #{tpu_custom_call.1} parent=5 // pred_check_branch
        %134 = sbr.rel (%p132) target = $region36
      $region35: #{tpu_custom_call.1} parent=5 // pred_region
        %s135 = ssub.s32 %s11, 2
        // Predicated region
        $region37: #{tpu_custom_call.1} parent=35 // pred_check
          %p136 = pneg %p61
        $region38: #{tpu_custom_call.1} parent=35 // pred_check_branch
          %138 = sbr.rel (%p136) target = $region40
        $region39: #{tpu_custom_call.1} parent=35 // pred_region
          %s139 = sand.u32 %s46, 1
          %s140 = scalar_lea.sflag [#allocation4], %s139
          %s141 = sand.u32 %s46, 1
          %s142 = smul.addr %s141, 8
          %s143 = scalar_lea.vmem [#allocation5], %s142
          %145 = dma.done %s140, 128
        $region40: #{tpu_custom_call.1} parent=35 // pred_fallthru
          _
      $region36: #{tpu_custom_call.1} parent=5 // pred_fallthru
        _
    $region6: #{tpu_custom_call.1} parent=1 // loop_footer
      %s15 = sadd.s32 1, %s11
    $region7: #{tpu_custom_call.1} parent=1 // loop_footer_branch
      %10 = sbr.rel target = $region3
    $region8: #{tpu_custom_call.1} parent=1 // loop_exit
      _
    %146 = vsyncpa [#allocation3], 1
    %s147 = scalar_lea.sflag [#allocation3], 1
    %148 = vsyncpa %s147, 1
    %149 = vsyncpa [#allocation4], 1
    %s150 = scalar_lea.sflag [#allocation4], 1
    %151 = vsyncpa %s150, 1

</llo_original>
